<compile_context>
chip_gen: v7x
topology: tpu7x:2x2x1
jax: 0.10.0
libtpu: 0.0.40
codegen_flags: <defaults>
</compile_context>

<pallas_src>
import functools

import jax
import jax.numpy as jnp
from jax import lax
from jax.experimental import pallas as pl
from jax.experimental.pallas import tpu as pltpu

_EPS = 0.0001
_LANES = 128
_MAX_TILE_ROWS = 2048      # 2048*128*4B = 1 MiB per f32 input block
_NUM_CORE_SPLITS = 2       # leading "parallel" grid axis (uses both TCs on v7x)


def _dice_kernel(nrows_ref, p_ref, g_ref, m_ref, out_ref,
                 acc_i_ref, acc_p_ref, acc_g_ref, *,
                 tile_rows, tiles_per_core):
    c = pl.program_id(0)          # core-split index ("parallel")
    i = pl.program_id(1)          # tile index within the split ("arbitrary")
    n_i = pl.num_programs(1)

    @pl.when(i == 0)
    def _init():
        acc_i_ref[...] = jnp.zeros_like(acc_i_ref)
        acc_p_ref[...] = jnp.zeros_like(acc_p_ref)
        acc_g_ref[...] = jnp.zeros_like(acc_g_ref)

    # Cast in-kernel so bf16/f16 inputs stay narrow in HBM.
    p = p_ref[...].astype(jnp.float32)
    g = g_ref[...].astype(jnp.float32)
    m = m_ref[...].astype(jnp.float32)

    def _accumulate(pv, gv, mv):
        pm = pv * mv
        # Reduce over sublanes only; cross-lane reduction is deferred.
        acc_i_ref[...] += jnp.sum(pm * gv, axis=0, keepdims=True)  # pred*gt*mask
        acc_p_ref[...] += jnp.sum(pm, axis=0, keepdims=True)       # pred*mask
        acc_g_ref[...] += jnp.sum(gv * mv, axis=0, keepdims=True)  # gt*mask

    # Global row of this tile's first row (UNclamped -- used only for masking;
    # the BlockSpec index_map clamps the actual DMA so it never starts OOB).
    tile_start = (c * tiles_per_core + i) * tile_rows
    rows_left = nrows_ref[0] - tile_start

    @pl.when(rows_left >= tile_rows)
    def _full_tile():
        _accumulate(p, g, m)

    @pl.when(rows_left < tile_rows)
    def _ragged_tile():
        # Masks both the ragged tail of the array and fully-out-of-range
        # duplicate tiles (rows_left <= 0) of the core split.
        row_ids = lax.broadcasted_iota(jnp.int32, (tile_rows, _LANES), 0)
        valid = row_ids < rows_left
        _accumulate(jnp.where(valid, p, 0.0),
                    jnp.where(valid, g, 0.0),
                    jnp.where(valid, m, 0.0))

    @pl.when(i == n_i - 1)
    def _finalize():
        out_ref[...] = jnp.zeros_like(out_ref)
        out_ref[0:1, :] = acc_i_ref[...]
        out_ref[1:2, :] = acc_p_ref[...]
        out_ref[2:3, :] = acc_g_ref[...]


def _to_lane_slab(x):
    """Flatten to (rows, 128); only a small lane-tail is zero-padded."""
    flat = jnp.ravel(x)
    n = flat.shape[0]
    rem = n % _LANES
    if rem:
        # TODO(synk): this extra copy only happens when numel % 128 != 0.
        flat = jnp.pad(flat, (0, _LANES - rem))
    return flat.reshape(-1, _LANES)


@functools.partial(jax.jit, static_argnames=("max_tile_rows",))
def dice_loss(pred, gt, mask, weights=None, *, max_tile_rows=_MAX_TILE_ROWS):
    """Equivalent to DiceLoss.forward(pred, gt, mask, weights) (forward only)."""
    if weights is not None:
        mask = mask * weights  # matches `mask *= weights`

    p2 = _to_lane_slab(pred)
    g2 = _to_lane_slab(gt)
    m2 = _to_lane_slab(mask)
    rows = p2.shape[0]

    # Biggest row tile that never exceeds the array (full-array blocks are
    # always legal) and fits comfortably double-buffered in VMEM.
    tile_rows = rows if rows <= max_tile_rows else max_tile_rows
    tiles_total = pl.cdiv(rows, tile_rows)
    tiles_per_core = pl.cdiv(tiles_total, _NUM_CORE_SPLITS)

    def in_map(c, i, nrows_ref):
        # Clamp so the DMA window always starts inside the array; clamped
        # duplicate tiles are fully masked inside the kernel.
        t = c * tiles_per_core + i
        return (jnp.minimum(t, tiles_total - 1), 0)

    tile_spec = pl.BlockSpec((tile_rows, _LANES), in_map)
    out_spec = pl.BlockSpec((None, 8, _LANES), lambda c, i, nrows_ref: (c, 0, 0))

    kernel = functools.partial(_dice_kernel, tile_rows=tile_rows,
                               tiles_per_core=tiles_per_core)

    partials = pl.pallas_call(
        kernel,
        out_shape=jax.ShapeDtypeStruct((_NUM_CORE_SPLITS, 8, _LANES), jnp.float32),
        grid_spec=pltpu.PrefetchScalarGridSpec(
            num_scalar_prefetch=1,
            grid=(_NUM_CORE_SPLITS, tiles_per_core),
            in_specs=[tile_spec, tile_spec, tile_spec],
            out_specs=out_spec,
            scratch_shapes=[pltpu.VMEM((1, _LANES), jnp.float32)] * 3,
        ),
        compiler_params=pltpu.CompilerParams(
            dimension_semantics=("parallel", "arbitrary"),
            vmem_limit_bytes=32 * 1024 * 1024,
        ),
    )(jnp.array([rows], jnp.int32), p2, g2, m2)

    intersection = jnp.sum(partials[:, 0, :])
    union = jnp.sum(partials[:, 1, :]) + jnp.sum(partials[:, 2, :]) + _EPS
    return 1.0 - 2.0 * intersection / union


def _dice_loss_ref(pred, gt, mask, weights=None):
    if weights is not None:
        mask = mask * weights
    intersection = jnp.sum(pred * gt * mask)
    union = jnp.sum(pred * mask) + jnp.sum(gt * mask) + _EPS
    return 1.0 - 2.0 * intersection / union


if __name__ == "__main__":
    key = jax.random.PRNGKey(0)
    k1, k2, k3 = jax.random.split(key, 3)

    # NCHW, like the PyTorch module's conv outputs.
    N, C, H, W = 2, 4, 16, 16
    pred = jax.nn.sigmoid(jax.random.normal(k1, (N, C, H, W), jnp.float32))
    gt = (jax.random.uniform(k2, (N, C, H, W)) > 0.5).astype(jnp.float32)
    mask = (jax.random.uniform(k3, (N, C, H, W)) > 0.2).astype(jnp.float32)

    loss = jax.block_until_ready(dice_loss(pred, gt, mask))
    ref = _dice_loss_ref(pred, gt, mask)
    assert jnp.allclose(loss, ref, atol=1e-5, rtol=1e-5), (loss, ref)

    # Exercise the ragged / multi-tile / masked path (odd numel, lane-tail pad,
    # partial last tile) with a small forced tile size.
    k4, k5, k6 = jax.random.split(jax.random.PRNGKey(1), 3)
    shp = (2, 3, 13, 17)
    pred2 = jax.nn.sigmoid(jax.random.normal(k4, shp, jnp.float32))
    gt2 = (jax.random.uniform(k5, shp) > 0.5).astype(jnp.float32)
    mask2 = (jax.random.uniform(k6, shp) > 0.2).astype(jnp.float32)
    loss2 = jax.block_until_ready(dice_loss(pred2, gt2, mask2, max_tile_rows=8))
    ref2 = _dice_loss_ref(pred2, gt2, mask2)
    assert jnp.allclose(loss2, ref2, atol=1e-5, rtol=1e-5), (loss2, ref2)

    print("KERNEL_OK")
</pallas_src>

<mosaic_0001>
module attributes {stable_mosaic.version = 11 : i64} {
  func.func @_dice_kernel(%arg0: i32, %arg1: i32, %arg2: memref<1xi32, #tpu.memory_space<smem>>, %arg3: memref<16x128xf32, #tpu.memory_space<vmem>>, %arg4: memref<16x128xf32, #tpu.memory_space<vmem>>, %arg5: memref<16x128xf32, #tpu.memory_space<vmem>>, %arg6: memref<1x8x128xf32, #tpu.memory_space<vmem>>, %arg7: memref<1x128xf32, #tpu.memory_space<vmem>>, %arg8: memref<1x128xf32, #tpu.memory_space<vmem>>, %arg9: memref<1x128xf32, #tpu.memory_space<vmem>>) attributes {dimension_semantics = [#tpu.dimension_semantics<parallel>, #tpu.dimension_semantics<arbitrary>], iteration_bounds = array<i64: 2, 1>, scalar_prefetch = 1 : i64, scratch_operands = 3 : i64, tpu.core_type = #tpu.core_type<tc>, window_params = [{transform_indices = @transform_0, window_bounds = array<i64: 16, 128>}, {transform_indices = @transform_1, window_bounds = array<i64: 16, 128>}, {transform_indices = @transform_2, window_bounds = array<i64: 16, 128>}, {transform_indices = @transform_3, window_bounds = array<i64: 1, 8, 128>}]} {
    %c0_i32 = arith.constant 0 : i32
    %0 = arith.cmpi eq, %arg1, %c0_i32 : i32
    %1 = arith.extui %0 : i1 to i32
    %c0_i32_0 = arith.constant 0 : i32
    %2 = arith.cmpi ne, %1, %c0_i32_0 : i32
    scf.if %2 {
      %cst = arith.constant 0.000000e+00 : f32
      %20 = vector.broadcast %cst : f32 to vector<1x128xf32>
      %c0_13 = arith.constant 0 : index
      %c0_14 = arith.constant 0 : index
      %21 = vector.load %arg7[%c0_13, %c0_14] : memref<1x128xf32, #tpu.memory_space<vmem>>, vector<1x128xf32>
      tpu.vector_store %arg7[%c0_13, %c0_14], %20 {strides = array<i32>} : memref<1x128xf32, #tpu.memory_space<vmem>>, vector<1x128xf32>,
      %cst_15 = arith.constant 0.000000e+00 : f32
      %22 = vector.broadcast %cst_15 : f32 to vector<1x128xf32>
      %c0_16 = arith.constant 0 : index
      %c0_17 = arith.constant 0 : index
      %23 = vector.load %arg8[%c0_16, %c0_17] : memref<1x128xf32, #tpu.memory_space<vmem>>, vector<1x128xf32>
      tpu.vector_store %arg8[%c0_16, %c0_17], %22 {strides = array<i32>} : memref<1x128xf32, #tpu.memory_space<vmem>>, vector<1x128xf32>,
      %cst_18 = arith.constant 0.000000e+00 : f32
      %24 = vector.broadcast %cst_18 : f32 to vector<1x128xf32>
      %c0_19 = arith.constant 0 : index
      %c0_20 = arith.constant 0 : index
      %25 = vector.load %arg9[%c0_19, %c0_20] : memref<1x128xf32, #tpu.memory_space<vmem>>, vector<1x128xf32>
      tpu.vector_store %arg9[%c0_19, %c0_20], %24 {strides = array<i32>} : memref<1x128xf32, #tpu.memory_space<vmem>>, vector<1x128xf32>,
    } else {
    }
    %c0 = arith.constant 0 : index
    %c0_1 = arith.constant 0 : index
    %3 = vector.load %arg3[%c0, %c0_1] : memref<16x128xf32, #tpu.memory_space<vmem>>, vector<16x128xf32>
    %c0_2 = arith.constant 0 : index
    %c0_3 = arith.constant 0 : index
    %4 = vector.load %arg4[%c0_2, %c0_3] : memref<16x128xf32, #tpu.memory_space<vmem>>, vector<16x128xf32>
    %c0_4 = arith.constant 0 : index
    %c0_5 = arith.constant 0 : index
    %5 = vector.load %arg5[%c0_4, %c0_5] : memref<16x128xf32, #tpu.memory_space<vmem>>, vector<16x128xf32>
    %c1_i32 = arith.constant 1 : i32
    %6 = arith.muli %arg0, %c1_i32 : i32
    %7 = arith.addi %6, %arg1 : i32
    %c16_i32 = arith.constant 16 : i32
    %8 = arith.muli %7, %c16_i32 : i32
    %c0_6 = arith.constant 0 : index
    %9 = memref.load %arg2[%c0_6] : memref<1xi32, #tpu.memory_space<smem>>
    %10 = arith.subi %9, %8 : i32
    %c16_i32_7 = arith.constant 16 : i32
    %11 = arith.cmpi sge, %10, %c16_i32_7 : i32
    %12 = arith.extui %11 : i1 to i32
    %c0_i32_8 = arith.constant 0 : i32
    %13 = arith.cmpi ne, %12, %c0_i32_8 : i32
    scf.if %13 {
      %20 = arith.mulf %3, %5 : vector<16x128xf32>
      %c0_13 = arith.constant 0 : index
      %c0_14 = arith.constant 0 : index
      %21 = vector.load %arg7[%c0_13, %c0_14] : memref<1x128xf32, #tpu.memory_space<vmem>>, vector<1x128xf32>
      %22 = arith.mulf %20, %4 : vector<16x128xf32>
      %cst = arith.constant dense<0.000000e+00> : vector<128xf32>
      %23 = vector.multi_reduction <add>, %22, %cst [0] : vector<16x128xf32> to vector<128xf32>
      %24 = vector.shape_cast %23 : vector<128xf32> to vector<1x128xf32>
      %25 = arith.addf %21, %24 : vector<1x128xf32>
      %c0_15 = arith.constant 0 : index
      %c0_16 = arith.constant 0 : index
      %26 = vector.load %arg7[%c0_15, %c0_16] : memref<1x128xf32, #tpu.memory_space<vmem>>, vector<1x128xf32>
      tpu.vector_store %arg7[%c0_15, %c0_16], %25 {strides = array<i32>} : memref<1x128xf32, #tpu.memory_space<vmem>>, vector<1x128xf32>,
      %c0_17 = arith.constant 0 : index
      %c0_18 = arith.constant 0 : index
      %27 = vector.load %arg8[%c0_17, %c0_18] : memref<1x128xf32, #tpu.memory_space<vmem>>, vector<1x128xf32>
      %cst_19 = arith.constant dense<0.000000e+00> : vector<128xf32>
      %28 = vector.multi_reduction <add>, %20, %cst_19 [0] : vector<16x128xf32> to vector<128xf32>
      %29 = vector.shape_cast %28 : vector<128xf32> to vector<1x128xf32>
      %30 = arith.addf %27, %29 : vector<1x128xf32>
      %c0_20 = arith.constant 0 : index
      %c0_21 = arith.constant 0 : index
      %31 = vector.load %arg8[%c0_20, %c0_21] : memref<1x128xf32, #tpu.memory_space<vmem>>, vector<1x128xf32>
      tpu.vector_store %arg8[%c0_20, %c0_21], %30 {strides = array<i32>} : memref<1x128xf32, #tpu.memory_space<vmem>>, vector<1x128xf32>,
      %c0_22 = arith.constant 0 : index
      %c0_23 = arith.constant 0 : index
      %32 = vector.load %arg9[%c0_22, %c0_23] : memref<1x128xf32, #tpu.memory_space<vmem>>, vector<1x128xf32>
      %33 = arith.mulf %4, %5 : vector<16x128xf32>
      %cst_24 = arith.constant dense<0.000000e+00> : vector<128xf32>
      %34 = vector.multi_reduction <add>, %33, %cst_24 [0] : vector<16x128xf32> to vector<128xf32>
      %35 = vector.shape_cast %34 : vector<128xf32> to vector<1x128xf32>
      %36 = arith.addf %32, %35 : vector<1x128xf32>
      %c0_25 = arith.constant 0 : index
      %c0_26 = arith.constant 0 : index
      %37 = vector.load %arg9[%c0_25, %c0_26] : memref<1x128xf32, #tpu.memory_space<vmem>>, vector<1x128xf32>
      tpu.vector_store %arg9[%c0_25, %c0_26], %36 {strides = array<i32>} : memref<1x128xf32, #tpu.memory_space<vmem>>, vector<1x128xf32>,
    } else {
    }
    %c16_i32_9 = arith.constant 16 : i32
    %14 = arith.cmpi slt, %10, %c16_i32_9 : i32
    %15 = arith.extui %14 : i1 to i32
    %c0_i32_10 = arith.constant 0 : i32
    %16 = arith.cmpi ne, %15, %c0_i32_10 : i32
    scf.if %16 {
      %20 = tpu.iota {dimensions = array<i32: 0>} : vector<16x128xi32>
      %21 = vector.broadcast %10 : i32 to vector<16x128xi32>
      %22 = arith.cmpi slt, %20, %21 : vector<16x128xi32>
      %cst = arith.constant 0.000000e+00 : f32
      %23 = vector.broadcast %cst : f32 to vector<16x128xf32>
      %24 = arith.select %22, %3, %23 : vector<16x128xi1>, vector<16x128xf32>
      %cst_13 = arith.constant 0.000000e+00 : f32
      %25 = vector.broadcast %cst_13 : f32 to vector<16x128xf32>
      %26 = arith.select %22, %4, %25 : vector<16x128xi1>, vector<16x128xf32>
      %cst_14 = arith.constant 0.000000e+00 : f32
      %27 = vector.broadcast %cst_14 : f32 to vector<16x128xf32>
      %28 = arith.select %22, %5, %27 : vector<16x128xi1>, vector<16x128xf32>
      %29 = arith.mulf %24, %28 : vector<16x128xf32>
      %c0_15 = arith.constant 0 : index
      %c0_16 = arith.constant 0 : index
      %30 = vector.load %arg7[%c0_15, %c0_16] : memref<1x128xf32, #tpu.memory_space<vmem>>, vector<1x128xf32>
      %31 = arith.mulf %29, %26 : vector<16x128xf32>
      %cst_17 = arith.constant dense<0.000000e+00> : vector<128xf32>
      %32 = vector.multi_reduction <add>, %31, %cst_17 [0] : vector<16x128xf32> to vector<128xf32>
      %33 = vector.shape_cast %32 : vector<128xf32> to vector<1x128xf32>
      %34 = arith.addf %30, %33 : vector<1x128xf32>
      %c0_18 = arith.constant 0 : index
      %c0_19 = arith.constant 0 : index
      %35 = vector.load %arg7[%c0_18, %c0_19] : memref<1x128xf32, #tpu.memory_space<vmem>>, vector<1x128xf32>
      tpu.vector_store %arg7[%c0_18, %c0_19], %34 {strides = array<i32>} : memref<1x128xf32, #tpu.memory_space<vmem>>, vector<1x128xf32>,
      %c0_20 = arith.constant 0 : index
      %c0_21 = arith.constant 0 : index
      %36 = vector.load %arg8[%c0_20, %c0_21] : memref<1x128xf32, #tpu.memory_space<vmem>>, vector<1x128xf32>
      %cst_22 = arith.constant dense<0.000000e+00> : vector<128xf32>
      %37 = vector.multi_reduction <add>, %29, %cst_22 [0] : vector<16x128xf32> to vector<128xf32>
      %38 = vector.shape_cast %37 : vector<128xf32> to vector<1x128xf32>
      %39 = arith.addf %36, %38 : vector<1x128xf32>
      %c0_23 = arith.constant 0 : index
      %c0_24 = arith.constant 0 : index
      %40 = vector.load %arg8[%c0_23, %c0_24] : memref<1x128xf32, #tpu.memory_space<vmem>>, vector<1x128xf32>
      tpu.vector_store %arg8[%c0_23, %c0_24], %39 {strides = array<i32>} : memref<1x128xf32, #tpu.memory_space<vmem>>, vector<1x128xf32>,
      %c0_25 = arith.constant 0 : index
      %c0_26 = arith.constant 0 : index
      %41 = vector.load %arg9[%c0_25, %c0_26] : memref<1x128xf32, #tpu.memory_space<vmem>>, vector<1x128xf32>
      %42 = arith.mulf %26, %28 : vector<16x128xf32>
      %cst_27 = arith.constant dense<0.000000e+00> : vector<128xf32>
      %43 = vector.multi_reduction <add>, %42, %cst_27 [0] : vector<16x128xf32> to vector<128xf32>
      %44 = vector.shape_cast %43 : vector<128xf32> to vector<1x128xf32>
      %45 = arith.addf %41, %44 : vector<1x128xf32>
      %c0_28 = arith.constant 0 : index
      %c0_29 = arith.constant 0 : index
      %46 = vector.load %arg9[%c0_28, %c0_29] : memref<1x128xf32, #tpu.memory_space<vmem>>, vector<1x128xf32>
      tpu.vector_store %arg9[%c0_28, %c0_29], %45 {strides = array<i32>} : memref<1x128xf32, #tpu.memory_space<vmem>>, vector<1x128xf32>,
    } else {
    }
    %c0_i32_11 = arith.constant 0 : i32
    %17 = arith.cmpi eq, %arg1, %c0_i32_11 : i32
    %18 = arith.extui %17 : i1 to i32
    %c0_i32_12 = arith.constant 0 : i32
    %19 = arith.cmpi ne, %18, %c0_i32_12 : i32
    scf.if %19 {
      %cst = arith.constant 0.000000e+00 : f32
      %20 = vector.broadcast %cst : f32 to vector<8x128xf32>
      %c0_13 = arith.constant 0 : index
      %c0_14 = arith.constant 0 : index
      %c0_15 = arith.constant 0 : index
      %21 = vector.load %arg6[%c0_13, %c0_14, %c0_15] : memref<1x8x128xf32, #tpu.memory_space<vmem>>, vector<1x8x128xf32>
      %22 = vector.shape_cast %21 : vector<1x8x128xf32> to vector<8x128xf32>
      %23 = vector.shape_cast %20 : vector<8x128xf32> to vector<1x8x128xf32>
      tpu.vector_store %arg6[%c0_13, %c0_14, %c0_15], %23 {strides = array<i32>} : memref<1x8x128xf32, #tpu.memory_space<vmem>>, vector<1x8x128xf32>,
      %c0_16 = arith.constant 0 : index
      %c0_17 = arith.constant 0 : index
      %24 = vector.load %arg7[%c0_16, %c0_17] : memref<1x128xf32, #tpu.memory_space<vmem>>, vector<1x128xf32>
      %c0_18 = arith.constant 0 : index
      %c0_19 = arith.constant 0 : index
      %c0_20 = arith.constant 0 : index
      %25 = vector.load %arg6[%c0_18, %c0_19, %c0_20] : memref<1x8x128xf32, #tpu.memory_space<vmem>>, vector<1x1x128xf32>
      %26 = vector.shape_cast %25 : vector<1x1x128xf32> to vector<1x128xf32>
      %27 = vector.shape_cast %24 : vector<1x128xf32> to vector<1x1x128xf32>
      tpu.vector_store %arg6[%c0_18, %c0_19, %c0_20], %27 {strides = array<i32>} : memref<1x8x128xf32, #tpu.memory_space<vmem>>, vector<1x1x128xf32>,
      %c0_21 = arith.constant 0 : index
      %c0_22 = arith.constant 0 : index
      %28 = vector.load %arg8[%c0_21, %c0_22] : memref<1x128xf32, #tpu.memory_space<vmem>>, vector<1x128xf32>
      %c0_23 = arith.constant 0 : index
      %c1 = arith.constant 1 : index
      %c0_24 = arith.constant 0 : index
      %29 = vector.load %arg6[%c0_23, %c1, %c0_24] : memref<1x8x128xf32, #tpu.memory_space<vmem>>, vector<1x1x128xf32>
      %30 = vector.shape_cast %29 : vector<1x1x128xf32> to vector<1x128xf32>
      %31 = vector.shape_cast %28 : vector<1x128xf32> to vector<1x1x128xf32>
      tpu.vector_store %arg6[%c0_23, %c1, %c0_24], %31 {strides = array<i32>} : memref<1x8x128xf32, #tpu.memory_space<vmem>>, vector<1x1x128xf32>,
      %c0_25 = arith.constant 0 : index
      %c0_26 = arith.constant 0 : index
      %32 = vector.load %arg9[%c0_25, %c0_26] : memref<1x128xf32, #tpu.memory_space<vmem>>, vector<1x128xf32>
      %c0_27 = arith.constant 0 : index
      %c2 = arith.constant 2 : index
      %c0_28 = arith.constant 0 : index
      %33 = vector.load %arg6[%c0_27, %c2, %c0_28] : memref<1x8x128xf32, #tpu.memory_space<vmem>>, vector<1x1x128xf32>
      %34 = vector.shape_cast %33 : vector<1x1x128xf32> to vector<1x128xf32>
      %35 = vector.shape_cast %32 : vector<1x128xf32> to vector<1x1x128xf32>
      tpu.vector_store %arg6[%c0_27, %c2, %c0_28], %35 {strides = array<i32>} : memref<1x8x128xf32, #tpu.memory_space<vmem>>, vector<1x1x128xf32>,
    } else {
    }
    return
  }
  func.func @transform_0(%arg0: i32, %arg1: i32, %arg2: memref<1xi32, #tpu.memory_space<smem>>) -> (i32, i32) {
    %c1_i32 = arith.constant 1 : i32
    %0 = arith.muli %arg0, %c1_i32 : i32
    %1 = arith.addi %0, %arg1 : i32
    %c0_i32 = arith.constant 0 : i32
    %2 = arith.minsi %1, %c0_i32 : i32
    %c0_i32_0 = arith.constant 0 : i32
    %c0_i32_1 = arith.constant 0 : i32
    return %2, %c0_i32_0 : i32, i32
  }
  func.func @transform_1(%arg0: i32, %arg1: i32, %arg2: memref<1xi32, #tpu.memory_space<smem>>) -> (i32, i32) {
    %c1_i32 = arith.constant 1 : i32
    %0 = arith.muli %arg0, %c1_i32 : i32
    %1 = arith.addi %0, %arg1 : i32
    %c0_i32 = arith.constant 0 : i32
    %2 = arith.minsi %1, %c0_i32 : i32
    %c0_i32_0 = arith.constant 0 : i32
    %c0_i32_1 = arith.constant 0 : i32
    return %2, %c0_i32_0 : i32, i32
  }
  func.func @transform_2(%arg0: i32, %arg1: i32, %arg2: memref<1xi32, #tpu.memory_space<smem>>) -> (i32, i32) {
    %c1_i32 = arith.constant 1 : i32
    %0 = arith.muli %arg0, %c1_i32 : i32
    %1 = arith.addi %0, %arg1 : i32
    %c0_i32 = arith.constant 0 : i32
    %2 = arith.minsi %1, %c0_i32 : i32
    %c0_i32_0 = arith.constant 0 : i32
    %c0_i32_1 = arith.constant 0 : i32
    return %2, %c0_i32_0 : i32, i32
  }
  func.func @transform_3(%arg0: i32, %arg1: i32, %arg2: memref<1xi32, #tpu.memory_space<smem>>) -> (i32, i32, i32) {
    %c0_i32 = arith.constant 0 : i32
    %c0_i32_0 = arith.constant 0 : i32
    %c0_i32_1 = arith.constant 0 : i32
    return %arg0, %c0_i32, %c0_i32_0 : i32, i32, i32
  }
}

</mosaic_0001>

<llo_original>
// kernel: dice_loss.1
$region0: #{dice_loss.1}
  #allocation0 [shape = 'u32[]', space=smem, size = 0x4, offset = 0x4, fixed_abs, tag = 'smem constant byte address 0x4 - core index']
  #allocation1 [shape = 'u32[144,128]{1,0:T(1,128)}', space=vmem, size = 0x12000, scoped, tag = 'internal scratch']
  #allocation2 [shape = 'f32[1,128]{1,0:T(1,128)}', space=vmem, size = 0x200, scoped, tag = 'scratch operand']
  #allocation3 [shape = 'f32[1,128]{1,0:T(1,128)}', space=vmem, size = 0x200, scoped, tag = 'scratch operand']
  #allocation4 [shape = 'f32[1,128]{1,0:T(1,128)}', space=vmem, size = 0x200, scoped, tag = 'scratch operand']
  #allocation5 [shape = 's32[1]{0}', space=sflag, size = 0x4, scoped, tag = 'scoped memory for dice_loss.1']
  #allocation6 [shape = 's32[1]{0:T(128)S(6)}', space=smem, size = 0x200, scoped, tag = 'prefetched SMEM operand 0']
  %s0 = inlined_call_operand.<no memory space> [shape: s32[1], index: 0, kind: input, shape index: {}]
  %s1 = inlined_call_operand.vmem [shape: f32[16,128], index: 1, kind: input, shape index: {}]
  %s2 = inlined_call_operand.vmem [shape: f32[16,128], index: 2, kind: input, shape index: {}]
  %s3 = inlined_call_operand.vmem [shape: f32[16,128], index: 3, kind: input, shape index: {}]
  %s4 = inlined_call_operand.vmem [shape: f32[2,8,128], index: 4, kind: output, shape index: {}]
  %s5 = sld [smem:[#allocation0]]
  $region61: #{dice_loss.1} parent=0
    _
  %s7 = ssub.s32 1, %s5
  %s8 = scalar_select 0, %s7, %s5
  %9 = sst [smem:[#allocation6]] %s0
  loop: start=0, step=1, limit=4
  $region2: #{dice_loss.1} parent=0 // loop_pre_header
    _
  $region3: #{dice_loss.1} parent=0 // loop_header
    %s11 = sphi 0, %s15
    %p12 = scmp.ge.s32.totalorder %s11, 4
    %s18 = sphi 0, %s30
    %s19 = sphi 0, %s26
    %s20 = sphi 0, %s18
    %s21 = sphi 0, %s19
    %s22 = sphi 0, %s20
    %s23 = sphi 0, %s21
    %s39 = sphi 0, %s41
    %s42 = sphi 0, %s39
    %s43 = sphi 0, %s42
    %s59 = sphi 0, %s43
    %s71 = sphi 0, %s73
    %s74 = sphi 0, %s71
    %s75 = sphi 0, %s74
    %s91 = sphi 0, %s75
    %s103 = sphi 0, %s105
    %s106 = sphi 0, %s103
    %s107 = sphi 0, %s106
    %s123 = sphi 0, %s107
    %s129 = sphi 0, %s131
    %s132 = sphi 0, %s129
    %s133 = sphi 0, %s132
    %s149 = sphi 0, %s133
  $region4: #{dice_loss.1} parent=0 // loop_header_branch
    %14 = sbr.rel (%p12) target = $region8
  $region5: #{dice_loss.1} parent=0 // loop_body
    %s16 = ssub.s32 %s11, 1
    %s17 = ssub.s32 %s11, 2
    %s24 = sadd.s32 1, %s19
    %p25 = scmp.ge.s32.totalorder %s24, 1
    %s26 = scalar_select %p25, 0, %s24
    %s27 = sadd.s32 1, %s18
    %s28 = scalar_select %p25, %s27, %s18
    %p29 = scmp.ge.s32.totalorder %s28, 2
    %s30 = scalar_select %p29, 0, %s28
    %s31 = sadd.s32 %s18, %s19
    %p32 = scmp.lt.s32.totalorder %s31, 0
    %s33 = scalar_select %p32, %s31, 0
    %s34 = sadd.s32 %s30, %s26
    %p35 = scmp.lt.s32.totalorder %s34, 0
    %s36 = scalar_select %p35, %s34, 0
    %s37 = ssub.s32 %s33, %s36
    %p38 = scmp.eq.s32.totalorder %s37, 0
    %s40 = sadd.s32 %s39, 1
    %s41 = scalar_select %p38, %s39, %s40
    %p44 = pneg %p38
    %p45 = scmp.eq.s32.totalorder %s11, 1
    %p46 = por %p44, %p45
    %p47 = scmp.ne.s32.totalorder %s39, %s42
    %p48 = scmp.eq.s32.totalorder %s11, 0
    %p49 = por %p47, %p48
    %p50 = scmp.ne.s32.totalorder %s39, %s42
    %p51 = scmp.eq.s32.totalorder %s16, 1
    %p52 = por %p50, %p51
    %p53 = scmp.ne.s32.totalorder %s42, %s43
    %p54 = scmp.eq.s32.totalorder %s16, 0
    %p55 = por %p53, %p54
    %p56 = scmp.ne.s32.totalorder %s42, %s43
    %p57 = scmp.eq.s32.totalorder %s17, 1
    %p58 = por %p56, %p57
    %p60 = scmp.ne.s32.totalorder %s43, %s59
    %p61 = scmp.eq.s32.totalorder %s17, 0
    %p62 = por %p60, %p61
    %s63 = sadd.s32 %s18, %s19
    %p64 = scmp.lt.s32.totalorder %s63, 0
    %s65 = scalar_select %p64, %s63, 0
    %s66 = sadd.s32 %s30, %s26
    %p67 = scmp.lt.s32.totalorder %s66, 0
    %s68 = scalar_select %p67, %s66, 0
    %s69 = ssub.s32 %s65, %s68
    %p70 = scmp.eq.s32.totalorder %s69, 0
    %s72 = sadd.s32 %s71, 1
    %s73 = scalar_select %p70, %s71, %s72
    %p76 = pneg %p70
    %p77 = scmp.eq.s32.totalorder %s11, 1
    %p78 = por %p76, %p77
    %p79 = scmp.ne.s32.totalorder %s71, %s74
    %p80 = scmp.eq.s32.totalorder %s11, 0
    %p81 = por %p79, %p80
    %p82 = scmp.ne.s32.totalorder %s71, %s74
    %p83 = scmp.eq.s32.totalorder %s16, 1
    %p84 = por %p82, %p83
    %p85 = scmp.ne.s32.totalorder %s74, %s75
    %p86 = scmp.eq.s32.totalorder %s16, 0
    %p87 = por %p85, %p86
    %p88 = scmp.ne.s32.totalorder %s74, %s75
    %p89 = scmp.eq.s32.totalorder %s17, 1
    %p90 = por %p88, %p89
    %p92 = scmp.ne.s32.totalorder %s75, %s91
    %p93 = scmp.eq.s32.totalorder %s17, 0
    %p94 = por %p92, %p93
    %s95 = sadd.s32 %s18, %s19
    %p96 = scmp.lt.s32.totalorder %s95, 0
    %s97 = scalar_select %p96, %s95, 0
    %s98 = sadd.s32 %s30, %s26
    %p99 = scmp.lt.s32.totalorder %s98, 0
    %s100 = scalar_select %p99, %s98, 0
    %s101 = ssub.s32 %s97, %s100
    %p102 = scmp.eq.s32.totalorder %s101, 0
    %s104 = sadd.s32 %s103, 1
    %s105 = scalar_select %p102, %s103, %s104
    %p108 = pneg %p102
    %p109 = scmp.eq.s32.totalorder %s11, 1
    %p110 = por %p108, %p109
    %p111 = scmp.ne.s32.totalorder %s103, %s106
    %p112 = scmp.eq.s32.totalorder %s11, 0
    %p113 = por %p111, %p112
    %p114 = scmp.ne.s32.totalorder %s103, %s106
    %p115 = scmp.eq.s32.totalorder %s16, 1
    %p116 = por %p114, %p115
    %p117 = scmp.ne.s32.totalorder %s106, %s107
    %p118 = scmp.eq.s32.totalorder %s16, 0
    %p119 = por %p117, %p118
    %p120 = scmp.ne.s32.totalorder %s106, %s107
    %p121 = scmp.eq.s32.totalorder %s17, 1
    %p122 = por %p120, %p121
    %p124 = scmp.ne.s32.totalorder %s107, %s123
    %p125 = scmp.eq.s32.totalorder %s17, 0
    %p126 = por %p124, %p125
    %s127 = ssub.s32 %s18, %s30
    %p128 = scmp.eq.s32.totalorder %s127, 0
    %s130 = sadd.s32 %s129, 1
    %s131 = scalar_select %p128, %s129, %s130
    %p134 = pneg %p128
    %p135 = scmp.eq.s32.totalorder %s11, 1
    %p136 = por %p134, %p135
    %p137 = scmp.ne.s32.totalorder %s129, %s132
    %p138 = scmp.eq.s32.totalorder %s11, 0
    %p139 = por %p137, %p138
    %p140 = scmp.ne.s32.totalorder %s129, %s132
    %p141 = scmp.eq.s32.totalorder %s16, 1
    %p142 = por %p140, %p141
    %p143 = scmp.ne.s32.totalorder %s132, %s133
    %p144 = scmp.eq.s32.totalorder %s16, 0
    %p145 = por %p143, %p144
    %p146 = scmp.ne.s32.totalorder %s132, %s133
    %p147 = scmp.eq.s32.totalorder %s17, 1
    %p148 = por %p146, %p147
    %p150 = scmp.ne.s32.totalorder %s133, %s149
    %p151 = scmp.eq.s32.totalorder %s17, 0
    %p152 = por %p150, %p151
    %p153 = scmp.le.s32.totalorder 1, %s11
    %p154 = scmp.lt.s32.totalorder %s11, 3
    %p155 = pnand %p153, %p154
    %p156 = pneg %p155
    // Predicated region
    $region9: #{dice_loss.1} parent=5 // pred_check
      _
    $region10: #{dice_loss.1} parent=5 // pred_check_branch
      %158 = sbr.rel (%p155) target = $region12
    $region11: #{dice_loss.1} parent=5 // pred_region
      %s159 = ssub.s32 %s11, 1
    $region12: #{dice_loss.1} parent=5 // pred_fallthru
      _
    %p160 = scmp.lt.s32.totalorder %s11, 2
    // Predicated region
    $region13: #{dice_loss.1} parent=5 // pred_check
      %p161 = pneg %p160
    $region14: #{dice_loss.1} parent=5 // pred_check_branch
      %163 = sbr.rel (%p161) target = $region16
    $region15: #{dice_loss.1} parent=5 // pred_region
      // Predicated region
      $region17: #{dice_loss.1} parent=15 // pred_check
        %p164 = pneg %p49
      $region18: #{dice_loss.1} parent=15 // pred_check_branch
        %166 = sbr.rel (%p164) target = $region20
      $region19: #{dice_loss.1} parent=15 // pred_region
        %s167 = sadd.s32 %s18, %s19
        %p168 = scmp.lt.s32.totalorder %s167, 0
        %s169 = scalar_select %p168, %s167, 0
        %s170 = smul.u32 2, %s169
        %p171 = scmp.lt.s32.totalorder %s170, 1
        %s172 = scalar_select %p171, %s170, 1
        %s173 = smul.addr %s172, 8
        %s174 = scalar_lea.vmem %s1, %s173
        %s175 = sadd.s32 %s18, %s19
        %p176 = scmp.lt.s32.totalorder %s175, 0
        %s177 = scalar_select %p176, %s175, 0
        %s178 = smul.u32 2, %s177
      $region20: #{dice_loss.1} parent=15 // pred_fallthru
        _
      // Predicated region
      $region21: #{dice_loss.1} parent=15 // pred_check
        %p179 = pneg %p81
      $region22: #{dice_loss.1} parent=15 // pred_check_branch
        %181 = sbr.rel (%p179) target = $region24
      $region23: #{dice_loss.1} parent=15 // pred_region
        %s182 = sadd.s32 %s18, %s19
        %p183 = scmp.lt.s32.totalorder %s182, 0
        %s184 = scalar_select %p183, %s182, 0
        %s185 = smul.u32 2, %s184
        %p186 = scmp.lt.s32.totalorder %s185, 1
        %s187 = scalar_select %p186, %s185, 1
        %s188 = smul.addr %s187, 8
        %s189 = scalar_lea.vmem %s2, %s188
        %s190 = sadd.s32 %s18, %s19
        %p191 = scmp.lt.s32.totalorder %s190, 0
        %s192 = scalar_select %p191, %s190, 0
        %s193 = smul.u32 2, %s192
      $region24: #{dice_loss.1} parent=15 // pred_fallthru
        _
      // Predicated region
      $region25: #{dice_loss.1} parent=15 // pred_check
        %p194 = pneg %p113
      $region26: #{dice_loss.1} parent=15 // pred_check_branch
        %196 = sbr.rel (%p194) target = $region28
      $region27: #{dice_loss.1} parent=15 // pred_region
        %s197 = sadd.s32 %s18, %s19
        %p198 = scmp.lt.s32.totalorder %s197, 0
        %s199 = scalar_select %p198, %s197, 0
        %s200 = smul.u32 2, %s199
        %p201 = scmp.lt.s32.totalorder %s200, 1
        %s202 = scalar_select %p201, %s200, 1
        %s203 = smul.addr %s202, 8
        %s204 = scalar_lea.vmem %s3, %s203
        %s205 = sadd.s32 %s18, %s19
        %p206 = scmp.lt.s32.totalorder %s205, 0
        %s207 = scalar_select %p206, %s205, 0
        %s208 = smul.u32 2, %s207
      $region28: #{dice_loss.1} parent=15 // pred_fallthru
        _
    $region16: #{dice_loss.1} parent=5 // pred_fallthru
      _
    %p209 = scmp.le.s32.totalorder 1, %s11
    %p210 = scmp.lt.s32.totalorder %s11, 3
    %p211 = pnand %p209, %p210
    %p212 = pneg %p211
    // Predicated region
    $region29: #{dice_loss.1} parent=5 // pred_check
      _
    $region30: #{dice_loss.1} parent=5 // pred_check_branch
      %214 = sbr.rel (%p211) target = $region32
    $region31: #{dice_loss.1} parent=5 // pred_region
      %s215 = ssub.s32 %s11, 1
      %s216 = sadd.s32 %s20, %s21
      %p217 = scmp.lt.s32.totalorder %s216, 0
      %s218 = scalar_select %p217, %s216, 0
      %s219 = smul.u32 2, %s218
      %p220 = scmp.lt.s32.totalorder %s219, 1
      %s221 = scalar_select %p220, %s219, 1
      %s222 = smul.addr %s221, 8
      %s223 = scalar_lea.vmem %s1, %s222
      %p224 = pneg %p55
      %p225 = pneg %p52
      %s226 = sadd.s32 %s20, %s21
      %p227 = scmp.lt.s32.totalorder %s226, 0
      %s228 = scalar_select %p227, %s226, 0
      %s229 = smul.u32 2, %s228
      %p230 = scmp.lt.s32.totalorder %s229, 1
      %s231 = scalar_select %p230, %s229, 1
      %s232 = smul.addr %s231, 8
      %s233 = scalar_lea.vmem %s2, %s232
      %p234 = pneg %p87
      %p235 = pneg %p84
      %s236 = sadd.s32 %s20, %s21
      %p237 = scmp.lt.s32.totalorder %s236, 0
      %s238 = scalar_select %p237, %s236, 0
      %s239 = smul.u32 2, %s238
      %p240 = scmp.lt.s32.totalorder %s239, 1
      %s241 = scalar_select %p240, %s239, 1
      %s242 = smul.addr %s241, 8
      %s243 = scalar_lea.vmem %s3, %s242
      %p244 = pneg %p119
      %p245 = pneg %p116
      %p246 = pneg %p145
      %p247 = pneg %p142
      %p248 = scmp.lt.s32.totalorder %s20, 1
      %s249 = scalar_select %p248, %s20, 1
      %s250 = smul.addr %s249, 8
      %s251 = scalar_lea.vmem %s4, %s250
      %s252 = sadd.s32 %s20, %s21
      %p253 = scmp.lt.s32.totalorder %s252, 0
      %s254 = scalar_select %p253, %s252, 0
      %s255 = smul.u32 2, %s254
      %p256 = scmp.lt.s32.totalorder %s255, 1
      %s257 = scalar_select %p256, %s255, 1
      %s258 = smul.addr %s257, 8
      %s259 = scalar_lea.vmem %s1, %s258
      %s260 = sadd.s32 %s20, %s21
      %p261 = scmp.lt.s32.totalorder %s260, 0
      %s262 = scalar_select %p261, %s260, 0
      %s263 = smul.u32 2, %s262
      %s264 = sadd.s32 %s20, %s21
      %p265 = scmp.lt.s32.totalorder %s264, 0
      %s266 = scalar_select %p265, %s264, 0
      %s267 = smul.u32 2, %s266
      %p268 = scmp.lt.s32.totalorder %s267, 1
      %s269 = scalar_select %p268, %s267, 1
      %s270 = smul.addr %s269, 8
      %s271 = scalar_lea.vmem %s2, %s270
      %s272 = sadd.s32 %s20, %s21
      %p273 = scmp.lt.s32.totalorder %s272, 0
      %s274 = scalar_select %p273, %s272, 0
      %s275 = smul.u32 2, %s274
      %s276 = sadd.s32 %s20, %s21
      %p277 = scmp.lt.s32.totalorder %s276, 0
      %s278 = scalar_select %p277, %s276, 0
      %s279 = smul.u32 2, %s278
      %p280 = scmp.lt.s32.totalorder %s279, 1
      %s281 = scalar_select %p280, %s279, 1
      %s282 = smul.addr %s281, 8
      %s283 = scalar_lea.vmem %s3, %s282
      %s284 = sadd.s32 %s20, %s21
      %p285 = scmp.lt.s32.totalorder %s284, 0
      %s286 = scalar_select %p285, %s284, 0
      %s287 = smul.u32 2, %s286
      %p288 = scmp.lt.s32.totalorder %s20, 1
      %s289 = scalar_select %p288, %s20, 1
      %s290 = smul.addr %s289, 8
      %s291 = scalar_lea.vmem %s4, %s290
      %p292 = scmp.eq.s32.totalorder %s21, 0
      // Predicated region
      $region33: #{dice_loss.1} parent=31 // pred_check
        %p293 = pneg %p292
      $region34: #{dice_loss.1} parent=31 // pred_check_branch
        %295 = sbr.rel (%p293) target = $region36
      $region35: #{dice_loss.1} parent=31 // pred_region
        %296 = vst [vmem:[#allocation2] sm:$0x1] 0.0
        %297 = vst [vmem:[#allocation3] sm:$0x1] 0.0
        %298 = vst [vmem:[#allocation4] sm:$0x1] 0.0
      $region36: #{dice_loss.1} parent=31 // pred_fallthru
        _
      %v299 = vld [vmem:[%s259] sm:$0xff]
      %v300 = vld [vmem:[%s259 + $0x8] sm:$0xff]
      %v301 = vld [vmem:[%s271] sm:$0xff]
      %v302 = vld [vmem:[%s271 + $0x8] sm:$0xff]
      %v303 = vld [vmem:[%s283] sm:$0xff]
      %v304 = vld [vmem:[%s283 + $0x8] sm:$0xff]
      %s305 = sadd.s32 %s20, %s21
      %s306 = smul.u32 %s305, 16
      %s307 = sld [smem:[#allocation6]]
      %s308 = ssub.s32 %s307, %s306
      %p309 = scmp.ge.s32.totalorder %s308, 16
      // Predicated region
      $region37: #{dice_loss.1} parent=31 // pred_check
        %p310 = pneg %p309
      $region38: #{dice_loss.1} parent=31 // pred_check_branch
        %312 = sbr.rel (%p310) target = $region40
      $region39: #{dice_loss.1} parent=31 // pred_region
        %v313 = vmul.f32 %v299, %v303
        %v314 = vmul.f32 %v300, %v304
        %v315 = vld [vmem:[#allocation2] sm:$0x1]
        %v316 = vmul.f32 %v313, %v301
        %v317 = vmul.f32 %v314, %v302
        %v318 = vadd.f32 %v316, %v317
        %v319 = vrot.slane %v318, 4
        %v320 = vadd.f32 %v318, %v319
        %v321 = vrot.slane %v320, 2
        %v322 = vadd.f32 %v320, %v321
        %v323 = vrot.slane %v322, 1
        %v324 = vadd.f32 %v322, %v323
        %v325 = vadd.f32 %v315, %v324
        %326 = vst [vmem:[#allocation2] sm:$0x1] %v325
        %v327 = vld [vmem:[#allocation3] sm:$0x1]
        %v328 = vadd.f32 %v313, %v314
        %v329 = vrot.slane %v328, 4
        %v330 = vadd.f32 %v328, %v329
        %v331 = vrot.slane %v330, 2
        %v332 = vadd.f32 %v330, %v331
        %v333 = vrot.slane %v332, 1
        %v334 = vadd.f32 %v332, %v333
        %v335 = vadd.f32 %v327, %v334
        %336 = vst [vmem:[#allocation3] sm:$0x1] %v335
        %v337 = vld [vmem:[#allocation4] sm:$0x1]
        %v338 = vmul.f32 %v301, %v303
        %v339 = vmul.f32 %v302, %v304
        %v340 = vadd.f32 %v338, %v339
        %v341 = vrot.slane %v340, 4
        %v342 = vadd.f32 %v340, %v341
        %v343 = vrot.slane %v342, 2
        %v344 = vadd.f32 %v342, %v343
        %v345 = vrot.slane %v344, 1
        %v346 = vadd.f32 %v344, %v345
        %v347 = vadd.f32 %v337, %v346
        %348 = vst [vmem:[#allocation4] sm:$0x1] %v347
      $region40: #{dice_loss.1} parent=31 // pred_fallthru
        _
      %p349 = scmp.lt.s32.totalorder %s308, 16
      // Predicated region
      $region41: #{dice_loss.1} parent=31 // pred_check
        %p350 = pneg %p349
      $region42: #{dice_loss.1} parent=31 // pred_check_branch
        %352 = sbr.rel (%p350) target = $region44
      $region43: #{dice_loss.1} parent=31 // pred_region
        %v353 = vlaneseq
        %v354 = vshrl.u32 %v353, 7
        %v355 = vadd.s32 %v354, 8
        %v356 = vstv %s308
        %vm357 = vcmp.lt.s32.totalorder %v354, %v356
        %vm358 = vcmp.lt.s32.totalorder %v355, %v356
        %v359 = vsel %vm357, %v299, 0.0
        %v360 = vsel %vm358, %v300, 0.0
        %v361 = vsel %vm357, %v301, 0.0
        %v362 = vsel %vm358, %v302, 0.0
        %v363 = vsel %vm357, %v303, 0.0
        %v364 = vsel %vm358, %v304, 0.0
        %v365 = vmul.f32 %v359, %v363
        %v366 = vmul.f32 %v360, %v364
        %v367 = vld [vmem:[#allocation2] sm:$0x1]
        %v368 = vmul.f32 %v365, %v361
        %v369 = vmul.f32 %v366, %v362
        %v370 = vadd.f32 %v368, %v369
        %v371 = vrot.slane %v370, 4
        %v372 = vadd.f32 %v370, %v371
        %v373 = vrot.slane %v372, 2
        %v374 = vadd.f32 %v372, %v373
        %v375 = vrot.slane %v374, 1
        %v376 = vadd.f32 %v374, %v375
        %v377 = vadd.f32 %v367, %v376
        %378 = vst [vmem:[#allocation2] sm:$0x1] %v377
        %v379 = vld [vmem:[#allocation3] sm:$0x1]
        %v380 = vadd.f32 %v365, %v366
        %v381 = vrot.slane %v380, 4
        %v382 = vadd.f32 %v380, %v381
        %v383 = vrot.slane %v382, 2
        %v384 = vadd.f32 %v382, %v383
        %v385 = vrot.slane %v384, 1
        %v386 = vadd.f32 %v384, %v385
        %v387 = vadd.f32 %v379, %v386
        %388 = vst [vmem:[#allocation3] sm:$0x1] %v387
        %v389 = vld [vmem:[#allocation4] sm:$0x1]
        %v390 = vmul.f32 %v361, %v363
        %v391 = vmul.f32 %v362, %v364
        %v392 = vadd.f32 %v390, %v391
        %v393 = vrot.slane %v392, 4
        %v394 = vadd.f32 %v392, %v393
        %v395 = vrot.slane %v394, 2
        %v396 = vadd.f32 %v394, %v395
        %v397 = vrot.slane %v396, 1
        %v398 = vadd.f32 %v396, %v397
        %v399 = vadd.f32 %v389, %v398
        %400 = vst [vmem:[#allocation4] sm:$0x1] %v399
      $region44: #{dice_loss.1} parent=31 // pred_fallthru
        _
      // Predicated region
      $region45: #{dice_loss.1} parent=31 // pred_check
        %p401 = pneg %p292
      $region46: #{dice_loss.1} parent=31 // pred_check_branch
        %403 = sbr.rel (%p401) target = $region48
      $region47: #{dice_loss.1} parent=31 // pred_region
        %404 = vst [vmem:[%s291] sm:$0xff] 0.0
        %v405 = vld [vmem:[#allocation2] sm:$0x1]
        %406 = vst [vmem:[%s291] sm:$0x1] %v405
        %v407 = vld [vmem:[#allocation3] sm:$0x1]
        %408 = vst [vmem:[%s291 + $0x1] sm:$0x1] %v407
        %v409 = vld [vmem:[#allocation4] sm:$0x1]
        %410 = vst [vmem:[%s291 + $0x2] sm:$0x1] %v409
      $region48: #{dice_loss.1} parent=31 // pred_fallthru
        _
      %p411 = scmp.lt.s32.totalorder %s20, 1
      %s412 = scalar_select %p411, %s20, 1
      %s413 = smul.addr %s412, 8
      %s414 = scalar_lea.vmem %s4, %s413
      // Predicated region
      $region49: #{dice_loss.1} parent=31 // pred_check
        %p415 = pneg %p142
      $region50: #{dice_loss.1} parent=31 // pred_check_branch
        %417 = sbr.rel (%p415) target = $region52
      $region51: #{dice_loss.1} parent=31 // pred_region
        _
      $region52: #{dice_loss.1} parent=31 // pred_fallthru
        _
    $region32: #{dice_loss.1} parent=5 // pred_fallthru
      _
    %p418 = scmp.le.s32.totalorder 2, %s11
    // Predicated region
    $region53: #{dice_loss.1} parent=5 // pred_check
      %p419 = pneg %p418
    $region54: #{dice_loss.1} parent=5 // pred_check_branch
      %421 = sbr.rel (%p419) target = $region56
    $region55: #{dice_loss.1} parent=5 // pred_region
      %s422 = ssub.s32 %s11, 2
      // Predicated region
      $region57: #{dice_loss.1} parent=55 // pred_check
        %p423 = pneg %p148
      $region58: #{dice_loss.1} parent=55 // pred_check_branch
        %425 = sbr.rel (%p423) target = $region60
      $region59: #{dice_loss.1} parent=55 // pred_region
        %p426 = scmp.lt.s32.totalorder %s22, 1
        %s427 = scalar_select %p426, %s22, 1
        %s428 = smul.addr %s427, 8
        %s429 = scalar_lea.vmem %s4, %s428
      $region60: #{dice_loss.1} parent=55 // pred_fallthru
        _
    $region56: #{dice_loss.1} parent=5 // pred_fallthru
      _
  $region6: #{dice_loss.1} parent=0 // loop_footer
    %s15 = sadd.s32 1, %s11
  $region7: #{dice_loss.1} parent=0 // loop_footer_branch
    %10 = sbr.rel target = $region3
  $region8: #{dice_loss.1} parent=0 // loop_exit
    _

</llo_original>
